<compile_context>
chip_gen: v6e
topology: v6e:2x2x1
jax: 0.10.0
libtpu: 0.0.40
codegen_flags: <defaults>
</compile_context>

<pallas_src>
import math

import jax
import jax.numpy as jnp
from jax.experimental import pallas as pl
from jax.experimental.pallas import tpu as pltpu


def _attention_kernel(ht_ref, att_ref, ct_ref, score_ref):
    # ht_ref:    (BB, T, E) VMEM tile (BB batch rows per grid step)
    # att_ref:   (1, E)     lane-dense attention vector (full parameter)
    # ct_ref:    (BB, E)
    # score_ref: (BB, T)    lane-dense score tile (T on the lane axis)
    a = att_ref[...].astype(jnp.float32)                        # (1, E)

    # Logits: VPU broadcast multiply + lane reduce over E -> (BB, T).
    # (Kept on VPU/XLU: moving this to a degenerate N=1 MXU GEMV needs a
    #  (BB*T, 1) -> (BB, T) relayout; only worth switching if a bundle dump
    #  shows the XLU slots binding before vld.)
    s = jnp.sum(ht_ref[...].astype(jnp.float32) * a[jnp.newaxis, :, :],
                axis=-1)                                         # (BB, T)

    # Numerically stable softmax over T (lane axis).
    m = jnp.max(s, axis=-1, keepdims=True)                       # (BB, 1)
    e = jnp.exp(s - m)                                           # (BB, T)
    denom = jnp.sum(e, axis=-1, keepdims=True)                   # (BB, 1)
    p = e * pl.reciprocal(denom, approx=True)                    # (BB, T)

    # Weighted sum over T: re-read the tile from VMEM (cheaper than holding a
    # full f32 copy live through the softmax) -> (BB, E).
    ct = jnp.sum(ht_ref[...].astype(jnp.float32) * p[:, :, None], axis=1)

    ct_ref[...] = ct.astype(ct_ref.dtype)
    score_ref[...] = p.astype(score_ref.dtype)


def _ceil_to(x: int, m: int) -> int:
    return -(-x // m) * m


def _choose_batch_block(B, T, E, itemsize, target_tile_bytes):
    """Pick a sublane-aligned batch block BB and the padded total batch size.

    BB is always a multiple of the sublane pack (8 f32 / 16 bf16 / 32 int8),
    so the (BB, E) / (BB, T) output blocks obey the (8, 128) rule.  B is
    padded up to a multiple of BB instead of falling back to misaligned
    divisors or BB=1.
    """
    sub = {1: 32, 2: 16}.get(itemsize, 8)
    row_bytes = max(T * E * itemsize, 1)
    bb_cap = max(sub, (target_tile_bytes // row_bytes) // sub * sub)
    b_pad = _ceil_to(B, sub)

    if b_pad <= bb_cap:
        # Whole (padded) batch fits one tile.  Split into two equal sublane-
        # aligned halves when that adds no padding (>= 2 steps for DMA/compute
        # overlap and v7x 2-TC sharding) without shrinking BB below the pack.
        if b_pad >= 2 * sub and b_pad % (2 * sub) == 0:
            bb = b_pad // 2
        else:
            bb = b_pad
    else:
        bb = bb_cap

    # Keep the grid even for v7x's two TensorCores when it costs no extra
    # padding steps and BB stays sublane-aligned.
    steps = -(-b_pad // bb)
    if steps > 1 and steps % 2 == 1:
        bb_even = _ceil_to(-(-b_pad // (steps + 1)), sub)
        if bb_even >= sub and (-(-b_pad // bb_even)) % 2 == 0:
            bb = bb_even

    b_total = _ceil_to(b_pad, bb)
    return bb, b_total


def attention_pool(ht: jax.Array, att: jax.Array, *,
                   target_tile_bytes: int = 8 * 1024 * 1024):
    """ht: (B, T, E), att: (E, 1) -> (ct (B, E), score (B, T, 1))."""
    B, T, E = ht.shape
    assert att.shape == (E, 1)
    itemsize = jnp.dtype(ht.dtype).itemsize
    att_row = att.reshape(1, E)                     # lane-dense parameter layout

    # Per-TensorCore VMEM budget with 25% headroom for compiler scratch.
    try:
        phys_vmem = int(getattr(pltpu.get_tpu_info(), "vmem_capacity_bytes", 0))
    except Exception:
        phys_vmem = 0
    if phys_vmem <= 0:
        phys_vmem = 64 * 1024 * 1024                # conservative (v7x per-TC)
    vmem_budget = (phys_vmem * 3) // 4

    # Resident working set per step: 2x input tile (double buffer) plus ~2
    # full-tile f32 temporaries in the body (f32 -> 4x tile, bf16 -> 6x tile).
    # Clamp the tile target so the whole working set fits the budget.
    resident_factor = 2.0 + 8.0 / itemsize
    tgt = max(256 * 1024,
              min(target_tile_bytes, int(vmem_budget / resident_factor)))

    BB, b_total = _choose_batch_block(B, T, E, itemsize, tgt)
    grid = (b_total // BB,)

    ht_in = ht if b_total == B else jnp.pad(
        ht, ((0, b_total - B), (0, 0), (0, 0)))

    tile_bytes = BB * T * E * itemsize
    out_bytes = 2 * BB * (E + T) * 4                # double-buffered outputs (f32 bound)
    need = int(tile_bytes * resident_factor) + out_bytes
    vmem_limit = int(min(vmem_budget, max(32 * 1024 * 1024, need)))

    # Memory-bound cost hint: ht read once from HBM, small outputs, one exp/score.
    cost = pl.CostEstimate(
        flops=4 * b_total * T * E,
        transcendentals=b_total * T,
        bytes_accessed=(b_total * T * E + b_total * E + b_total * T + E) * itemsize,
    )

    grid_spec = pltpu.PrefetchScalarGridSpec(
        num_scalar_prefetch=0,
        grid=grid,
        in_specs=[
            pl.BlockSpec((BB, T, E), lambda b: (b, 0, 0)),
            pl.BlockSpec((1, E), lambda b: (0, 0)),
        ],
        out_specs=[
            pl.BlockSpec((BB, E), lambda b: (b, 0)),
            pl.BlockSpec((BB, T), lambda b: (b, 0)),    # lane-dense score
        ],
    )

    ct, score2d = pl.pallas_call(
        _attention_kernel,
        out_shape=(
            jax.ShapeDtypeStruct((b_total, E), ht.dtype),
            jax.ShapeDtypeStruct((b_total, T), ht.dtype),
        ),
        grid_spec=grid_spec,
        compiler_params=pltpu.CompilerParams(
            dimension_semantics=("parallel",),
            vmem_limit_bytes=vmem_limit,
        ),
        cost_estimate=cost,
    )(ht_in, att_row)

    if b_total != B:
        ct = ct[:B]
        score2d = score2d[:B]
    # Trailing singleton dim restored in the wrapper (keeps stores lane-dense).
    return ct, score2d[..., None]


def _reference(ht, att):
    # Pure-JAX reference mirroring the PyTorch forward (B > 1, T > 1 case).
    s = jnp.squeeze(jnp.matmul(ht, att), axis=-1)       # (B, T)
    p = jax.nn.softmax(s, axis=-1)[..., None]           # (B, T, 1)
    ct = jnp.sum(ht * p, axis=1)                        # (B, E)
    return ct, p


if __name__ == "__main__":
    key = jax.random.PRNGKey(0)
    k_ht, k_att = jax.random.split(key)

    # batch, seq, embedding_size: exercises a sublane-aligned BB=8 and a
    # 2-step (even) grid so both TensorCores on v7x get one block each.
    B, T, E = 16, 16, 64

    ht = jax.random.normal(k_ht, (B, T, E), dtype=jnp.float32)

    # xavier_normal_ init for att of shape (E, 1): std = sqrt(2 / (fan_in + fan_out))
    xavier_std = math.sqrt(2.0 / (E + 1))
    att = xavier_std * jax.random.normal(k_att, (E, 1), dtype=jnp.float32)

    ct, score = attention_pool(ht, att)
    jax.block_until_ready((ct, score))

    ct_ref, score_ref = _reference(ht, att)
    assert ct.shape == (B, E) and score.shape == (B, T, 1)
    # Tolerance accounts for the EUP approximate reciprocal in the softmax
    # denominator (relative error << 1e-3).
    assert jnp.allclose(score, score_ref, atol=2e-3, rtol=2e-3)
    assert jnp.allclose(ct, ct_ref, atol=2e-3, rtol=2e-3)

    print("KERNEL_OK")
</pallas_src>

<mosaic_0001>
module attributes {stable_mosaic.version = 11 : i64} {
  func.func @_attention_kernel(%arg0: i32, %arg1: memref<8x16x64xf32, #tpu.memory_space<vmem>>, %arg2: memref<1x64xf32, #tpu.memory_space<vmem>>, %arg3: memref<8x64xf32, #tpu.memory_space<vmem>>, %arg4: memref<8x16xf32, #tpu.memory_space<vmem>>) attributes {dimension_semantics = [#tpu.dimension_semantics<parallel>], iteration_bounds = array<i64: 2>, scalar_prefetch = 0 : i64, scratch_operands = 0 : i64, tpu.core_type = #tpu.core_type<tc>, window_params = [{transform_indices = @transform_0, window_bounds = array<i64: 8, 16, 64>}, {pipeline_mode = #tpu.pipeline_mode<synchronous>, transform_indices = @transform_1, window_bounds = array<i64: 1, 64>}, {transform_indices = @transform_2, window_bounds = array<i64: 8, 64>}, {transform_indices = @transform_3, window_bounds = array<i64: 8, 16>}]} {
    %c0 = arith.constant 0 : index
    %c0_0 = arith.constant 0 : index
    %0 = vector.load %arg2[%c0, %c0_0] : memref<1x64xf32, #tpu.memory_space<vmem>>, vector<1x64xf32>
    %c0_1 = arith.constant 0 : index
    %c0_2 = arith.constant 0 : index
    %c0_3 = arith.constant 0 : index
    %1 = vector.load %arg1[%c0_1, %c0_2, %c0_3] : memref<8x16x64xf32, #tpu.memory_space<vmem>>, vector<8x16x64xf32>
    %2 = vector.shape_cast %0 : vector<1x64xf32> to vector<1x1x64xf32>
    %3 = vector.broadcast %2 : vector<1x1x64xf32> to vector<8x16x64xf32>
    %4 = arith.mulf %1, %3 : vector<8x16x64xf32>
    %cst = arith.constant dense<0.000000e+00> : vector<8x16xf32>
    %5 = vector.multi_reduction <add>, %4, %cst [2] : vector<8x16x64xf32> to vector<8x16xf32>
    %cst_4 = arith.constant dense<0xFF800000> : vector<8xf32>
    %6 = vector.multi_reduction <maximumf>, %5, %cst_4 [1] : vector<8x16xf32> to vector<8xf32>
    %7 = vector.shape_cast %6 : vector<8xf32> to vector<8x1xf32>
    %8 = vector.broadcast %7 : vector<8x1xf32> to vector<8x16xf32>
    %9 = arith.subf %5, %8 : vector<8x16xf32>
    %10 = math.exp %9 : vector<8x16xf32>
    %cst_5 = arith.constant dense<0.000000e+00> : vector<8xf32>
    %11 = vector.multi_reduction <add>, %10, %cst_5 [1] : vector<8x16xf32> to vector<8xf32>
    %12 = vector.shape_cast %11 : vector<8xf32> to vector<8x1xf32>
    %13 = tpu.reciprocal %12 {approx = true} : vector<8x1xf32> -> vector<8x1xf32>
    %14 = vector.broadcast %13 : vector<8x1xf32> to vector<8x16xf32>
    %15 = arith.mulf %10, %14 : vector<8x16xf32>
    %c0_6 = arith.constant 0 : index
    %c0_7 = arith.constant 0 : index
    %c0_8 = arith.constant 0 : index
    %16 = vector.load %arg1[%c0_6, %c0_7, %c0_8] : memref<8x16x64xf32, #tpu.memory_space<vmem>>, vector<8x16x64xf32>
    %17 = vector.shape_cast %15 : vector<8x16xf32> to vector<8x16x1xf32>
    %18 = vector.broadcast %17 : vector<8x16x1xf32> to vector<8x16x64xf32>
    %19 = arith.mulf %16, %18 : vector<8x16x64xf32>
    %cst_9 = arith.constant dense<0.000000e+00> : vector<8x64xf32>
    %20 = vector.multi_reduction <add>, %19, %cst_9 [1] : vector<8x16x64xf32> to vector<8x64xf32>
    %c0_10 = arith.constant 0 : index
    %c0_11 = arith.constant 0 : index
    %21 = vector.load %arg3[%c0_10, %c0_11] : memref<8x64xf32, #tpu.memory_space<vmem>>, vector<8x64xf32>
    tpu.vector_store %arg3[%c0_10, %c0_11], %20 {strides = array<i32>} : memref<8x64xf32, #tpu.memory_space<vmem>>, vector<8x64xf32>,
    %c0_12 = arith.constant 0 : index
    %c0_13 = arith.constant 0 : index
    %22 = vector.load %arg4[%c0_12, %c0_13] : memref<8x16xf32, #tpu.memory_space<vmem>>, vector<8x16xf32>
    tpu.vector_store %arg4[%c0_12, %c0_13], %15 {strides = array<i32>} : memref<8x16xf32, #tpu.memory_space<vmem>>, vector<8x16xf32>,
    return
  }
  func.func @transform_0(%arg0: i32) -> (i32, i32, i32) {
    %c0_i32 = arith.constant 0 : i32
    %c0_i32_0 = arith.constant 0 : i32
    %c0_i32_1 = arith.constant 0 : i32
    return %arg0, %c0_i32, %c0_i32_0 : i32, i32, i32
  }
  func.func @transform_1(%arg0: i32) -> (i32, i32) {
    %c0_i32 = arith.constant 0 : i32
    %c0_i32_0 = arith.constant 0 : i32
    %c0_i32_1 = arith.constant 0 : i32
    return %c0_i32, %c0_i32_0 : i32, i32
  }
  func.func @transform_2(%arg0: i32) -> (i32, i32) {
    %c0_i32 = arith.constant 0 : i32
    %c0_i32_0 = arith.constant 0 : i32
    return %arg0, %c0_i32 : i32, i32
  }
  func.func @transform_3(%arg0: i32) -> (i32, i32) {
    %c0_i32 = arith.constant 0 : i32
    %c0_i32_0 = arith.constant 0 : i32
    return %arg0, %c0_i32 : i32, i32
  }
}

</mosaic_0001>

<llo_original>
// kernel: tpu_custom_call.1
$region0: #{tpu_custom_call.1}
  #allocation0 [shape = 'u32[]', space=smem, size = 0x4, offset = 0x4, fixed_abs, tag = 'smem constant byte address 0x4 - core index']
  #allocation1 [shape = 'u32[144,128]{1,0:T(1,128)}', space=vmem, size = 0x12000, scoped, tag = 'internal scratch']
  %s0 = inlined_call_operand.hbm [shape: f32[16,16,64], index: 0, kind: input, shape index: {}]
  %s1 = inlined_call_operand.vmem [shape: f32[1,64], index: 1, kind: input, shape index: {}]
  %s2 = inlined_call_operand.hbm [shape: f32[16,64], index: 2, kind: output, shape index: {0}]
  %s3 = inlined_call_operand.hbm [shape: f32[16,16], index: 3, kind: output, shape index: {1}]
  %4 = xla_tuple %s2, %s3
  %s5 = sld [smem:[#allocation0]]
  $region53: #{tpu_custom_call.1} parent=0
    _
  %s7 = ssub.s32 1, %s5
  %s8 = scalar_select 0, %s7, %s5
  $region1: #{tpu_custom_call.1} parent=0
    #allocation2 [shape = 'u8[131072]{0}', space=vmem, size = 0x20000, scoped, tag = 'input window, operand 0']
    #allocation3 [shape = 's32[2]{0}', space=sflag, size = 0x8, scoped, tag = 'scoped memory for tpu_custom_call.1']
    #allocation4 [shape = 's32[2]{0}', space=sflag, size = 0x8, scoped, tag = 'scoped memory for tpu_custom_call.1']
    #allocation5 [shape = 'u8[8192]{0}', space=vmem, size = 0x2000, scoped, tag = 'output window, operand 0']
    #allocation6 [shape = 'u8[8192]{0}', space=vmem, size = 0x2000, scoped, tag = 'output window, operand 1']
    #allocation7 [shape = 's32[2]{0}', space=sflag, size = 0x8, scoped, tag = 'scoped memory for tpu_custom_call.1']
    %9 = vsyncpa [#allocation3], 0
    %s10 = scalar_lea.sflag [#allocation3], 1
    %11 = vsyncpa %s10, 0
    %12 = vsyncpa [#allocation4], 0
    %s13 = scalar_lea.sflag [#allocation4], 1
    %14 = vsyncpa %s13, 0
    %15 = vsyncpa [#allocation7], 0
    %s16 = scalar_lea.sflag [#allocation7], 1
    %17 = vsyncpa %s16, 0
    loop: start=0, step=1, limit=4
    $region2: #{tpu_custom_call.1} parent=1 // loop_pre_header
      _
    $region3: #{tpu_custom_call.1} parent=1 // loop_header
      %s19 = sphi 0, %s23
      %p20 = scmp.ge.s32.totalorder %s19, 4
      %s29 = sphi 0, %s31
      %s32 = sphi 0, %s29
      %s33 = sphi 0, %s32
      %s49 = sphi 0, %s33
      %s53 = sphi 0, %s53
      %s55 = sphi 0, %s53
      %s56 = sphi 0, %s55
      %s70 = sphi 0, %s56
      %s76 = sphi 0, %s78
      %s79 = sphi 0, %s76
      %s80 = sphi 0, %s79
      %s96 = sphi 0, %s80
      %s102 = sphi 0, %s104
      %s105 = sphi 0, %s102
      %s106 = sphi 0, %s105
      %s122 = sphi 0, %s106
    $region4: #{tpu_custom_call.1} parent=1 // loop_header_branch
      %22 = sbr.rel (%p20) target = $region8
    $region5: #{tpu_custom_call.1} parent=1 // loop_body
      %s24 = ssub.s32 %s19, 1
      %s25 = ssub.s32 %s19, 2
      %s26 = sadd.s32 %s19, 1
      %s27 = ssub.s32 %s19, %s26
      %p28 = scmp.eq.s32.totalorder %s27, 0
      %s30 = sadd.s32 %s29, 1
      %s31 = scalar_select %p28, %s29, %s30
      %p34 = pneg %p28
      %p35 = scmp.eq.s32.totalorder %s19, 1
      %p36 = por %p34, %p35
      %p37 = scmp.ne.s32.totalorder %s29, %s32
      %p38 = scmp.eq.s32.totalorder %s19, 0
      %p39 = por %p37, %p38
      %p40 = scmp.ne.s32.totalorder %s29, %s32
      %p41 = scmp.eq.s32.totalorder %s24, 1
      %p42 = por %p40, %p41
      %p43 = scmp.ne.s32.totalorder %s32, %s33
      %p44 = scmp.eq.s32.totalorder %s24, 0
      %p45 = por %p43, %p44
      %p46 = scmp.ne.s32.totalorder %s32, %s33
      %p47 = scmp.eq.s32.totalorder %s25, 1
      %p48 = por %p46, %p47
      %p50 = scmp.ne.s32.totalorder %s33, %s49
      %p51 = scmp.eq.s32.totalorder %s25, 0
      %p52 = por %p50, %p51
      %s54 = sadd.s32 %s53, 1
      %p57 = scmp.eq.s32.totalorder %s19, 1
      %p58 = scmp.ne.s32.totalorder %s53, %s55
      %p59 = scmp.eq.s32.totalorder %s19, 0
      %p60 = por %p58, %p59
      %p61 = scmp.ne.s32.totalorder %s53, %s55
      %p62 = scmp.eq.s32.totalorder %s24, 1
      %p63 = por %p61, %p62
      %p64 = scmp.ne.s32.totalorder %s55, %s56
      %p65 = scmp.eq.s32.totalorder %s24, 0
      %p66 = por %p64, %p65
      %p67 = scmp.ne.s32.totalorder %s55, %s56
      %p68 = scmp.eq.s32.totalorder %s25, 1
      %p69 = por %p67, %p68
      %p71 = scmp.ne.s32.totalorder %s56, %s70
      %p72 = scmp.eq.s32.totalorder %s25, 0
      %p73 = por %p71, %p72
      %s74 = ssub.s32 %s19, %s26
      %p75 = scmp.eq.s32.totalorder %s74, 0
      %s77 = sadd.s32 %s76, 1
      %s78 = scalar_select %p75, %s76, %s77
      %p81 = pneg %p75
      %p82 = scmp.eq.s32.totalorder %s19, 1
      %p83 = por %p81, %p82
      %p84 = scmp.ne.s32.totalorder %s76, %s79
      %p85 = scmp.eq.s32.totalorder %s19, 0
      %p86 = por %p84, %p85
      %p87 = scmp.ne.s32.totalorder %s76, %s79
      %p88 = scmp.eq.s32.totalorder %s24, 1
      %p89 = por %p87, %p88
      %p90 = scmp.ne.s32.totalorder %s79, %s80
      %p91 = scmp.eq.s32.totalorder %s24, 0
      %p92 = por %p90, %p91
      %p93 = scmp.ne.s32.totalorder %s79, %s80
      %p94 = scmp.eq.s32.totalorder %s25, 1
      %p95 = por %p93, %p94
      %p97 = scmp.ne.s32.totalorder %s80, %s96
      %p98 = scmp.eq.s32.totalorder %s25, 0
      %p99 = por %p97, %p98
      %s100 = ssub.s32 %s19, %s26
      %p101 = scmp.eq.s32.totalorder %s100, 0
      %s103 = sadd.s32 %s102, 1
      %s104 = scalar_select %p101, %s102, %s103
      %p107 = pneg %p101
      %p108 = scmp.eq.s32.totalorder %s19, 1
      %p109 = por %p107, %p108
      %p110 = scmp.ne.s32.totalorder %s102, %s105
      %p111 = scmp.eq.s32.totalorder %s19, 0
      %p112 = por %p110, %p111
      %p113 = scmp.ne.s32.totalorder %s102, %s105
      %p114 = scmp.eq.s32.totalorder %s24, 1
      %p115 = por %p113, %p114
      %p116 = scmp.ne.s32.totalorder %s105, %s106
      %p117 = scmp.eq.s32.totalorder %s24, 0
      %p118 = por %p116, %p117
      %p119 = scmp.ne.s32.totalorder %s105, %s106
      %p120 = scmp.eq.s32.totalorder %s25, 1
      %p121 = por %p119, %p120
      %p123 = scmp.ne.s32.totalorder %s106, %s122
      %p124 = scmp.eq.s32.totalorder %s25, 0
      %p125 = por %p123, %p124
      %p126 = scmp.le.s32.totalorder 1, %s19
      %p127 = scmp.lt.s32.totalorder %s19, 3
      %p128 = pnand %p126, %p127
      %p129 = pneg %p128
      // Predicated region
      $region9: #{tpu_custom_call.1} parent=5 // pred_check
        _
      $region10: #{tpu_custom_call.1} parent=5 // pred_check_branch
        %131 = sbr.rel (%p128) target = $region12
      $region11: #{tpu_custom_call.1} parent=5 // pred_region
        %s132 = ssub.s32 %s19, 1
        // Predicated region
        $region13: #{tpu_custom_call.1} parent=11 // pred_check
          %p133 = pneg %p66
        $region14: #{tpu_custom_call.1} parent=11 // pred_check_branch
          %135 = sbr.rel (%p133) target = $region16
        $region15: #{tpu_custom_call.1} parent=11 // pred_region
          _
        $region16: #{tpu_custom_call.1} parent=11 // pred_fallthru
          _
      $region12: #{tpu_custom_call.1} parent=5 // pred_fallthru
        _
      %p136 = scmp.lt.s32.totalorder %s19, 2
      // Predicated region
      $region17: #{tpu_custom_call.1} parent=5 // pred_check
        %p137 = pneg %p136
      $region18: #{tpu_custom_call.1} parent=5 // pred_check_branch
        %139 = sbr.rel (%p137) target = $region20
      $region19: #{tpu_custom_call.1} parent=5 // pred_region
        // Predicated region
        $region21: #{tpu_custom_call.1} parent=19 // pred_check
          %p140 = pneg %p39
        $region22: #{tpu_custom_call.1} parent=19 // pred_check_branch
          %142 = sbr.rel (%p140) target = $region24
        $region23: #{tpu_custom_call.1} parent=19 // pred_region
          %s143 = sand.u32 %s29, 1
          %s144 = scalar_lea.sflag [#allocation3], %s143
          %s145 = sand.u32 %s29, 1
          %s146 = smul.addr %s145, 128
          %s147 = scalar_lea.vmem [#allocation2], %s146
          %s148 = smul.u32 8, %s19
          %s150 = ssub.s32 2048, 2048
          %151 = vsyncadd %s144, %s150
          %s152 = smul.addr %s148, 2
          %s153 = smul.addr %s152, 128
          %s154 = scalar_lea.hbm %s0, %s153
          %s155 = sshll.u32 %s147, 4
          %s156 = int_to_ptr.vmem [resolvable:$true] %s155
          %161 = dma.hbm_to_vmem [thread:$0]  %s154, 2048, %s156, %s144, 128, 128, 8
        $region24: #{tpu_custom_call.1} parent=19 // pred_fallthru
          _
      $region20: #{tpu_custom_call.1} parent=5 // pred_fallthru
        _
      %p162 = scmp.le.s32.totalorder 1, %s19
      %p163 = scmp.lt.s32.totalorder %s19, 3
      %p164 = pnand %p162, %p163
      %p165 = pneg %p164
      // Predicated region
      $region25: #{tpu_custom_call.1} parent=5 // pred_check
        _
      $region26: #{tpu_custom_call.1} parent=5 // pred_check_branch
        %167 = sbr.rel (%p164) target = $region28
      $region27: #{tpu_custom_call.1} parent=5 // pred_region
        %s168 = ssub.s32 %s19, 1
        %s169 = sand.u32 %s32, 1
        %s170 = scalar_lea.sflag [#allocation3], %s169
        %s171 = sand.u32 %s32, 1
        %s172 = smul.addr %s171, 128
        %s173 = scalar_lea.vmem [#allocation2], %s172
        // Predicated region
        $region29: #{tpu_custom_call.1} parent=27 // pred_check
          %p174 = pneg %p45
        $region30: #{tpu_custom_call.1} parent=27 // pred_check_branch
          %176 = sbr.rel (%p174) target = $region32
        $region31: #{tpu_custom_call.1} parent=27 // pred_region
          %177 = dma.done %s170, 2048
        $region32: #{tpu_custom_call.1} parent=27 // pred_fallthru
          _
        %s178 = sand.u32 %s32, 1
        %s179 = scalar_lea.sflag [#allocation3], %s178
        %s180 = sand.u32 %s32, 1
        %s181 = smul.addr %s180, 128
        %s182 = scalar_lea.vmem [#allocation2], %s181
        %p183 = pneg %p45
        %p184 = pneg %p42
        %p185 = pneg %p66
        %p186 = pneg %p63
        %p187 = pneg %p92
        %p188 = pneg %p89
        %s189 = sand.u32 %s79, 1
        %s190 = scalar_lea.sflag [#allocation4], %s189
        %s191 = sand.u32 %s79, 1
        %s192 = smul.addr %s191, 8
        %s193 = scalar_lea.vmem [#allocation5], %s192
        %p194 = pneg %p118
        %p195 = pneg %p115
        %s196 = sand.u32 %s105, 1
        %s197 = scalar_lea.sflag [#allocation7], %s196
        %s198 = sand.u32 %s105, 1
        %s199 = smul.addr %s198, 8
        %s200 = scalar_lea.vmem [#allocation6], %s199
        %s201 = smul.u32 8, %s24
        %v202 = vld [vmem:[%s1] sm:$0x1]
        %v203 = vld [vmem:[%s173] sm:$0xff]
        %v204 = vld [vmem:[%s173 + $0x8] sm:$0xff]
        %v205 = vld [vmem:[%s173 + $0x10] sm:$0xff]
        %v206 = vld [vmem:[%s173 + $0x18] sm:$0xff]
        %v207 = vld [vmem:[%s173 + $0x20] sm:$0xff]
        %v208 = vld [vmem:[%s173 + $0x28] sm:$0xff]
        %v209 = vld [vmem:[%s173 + $0x30] sm:$0xff]
        %v210 = vld [vmem:[%s173 + $0x38] sm:$0xff]
        %v211 = vld [vmem:[%s173 + $0x40] sm:$0xff]
        %v212 = vld [vmem:[%s173 + $0x48] sm:$0xff]
        %v213 = vld [vmem:[%s173 + $0x50] sm:$0xff]
        %v214 = vld [vmem:[%s173 + $0x58] sm:$0xff]
        %v215 = vld [vmem:[%s173 + $0x60] sm:$0xff]
        %v216 = vld [vmem:[%s173 + $0x68] sm:$0xff]
        %v217 = vld [vmem:[%s173 + $0x70] sm:$0xff]
        %v218 = vld [vmem:[%s173 + $0x78] sm:$0xff]
        %v220 = vlaneseq
        %v221 = vshrl.u32 %v220, 7
        %v222 = vsub.s32 0, %v221
        %v223 = vrot.slane %v202, %v222
        %v225 = vmul.f32 %v203, %v223
        %v226 = vmul.f32 %v204, %v223
        %v227 = vmul.f32 %v205, %v223
        %v228 = vmul.f32 %v206, %v223
        %v229 = vmul.f32 %v207, %v223
        %v230 = vmul.f32 %v208, %v223
        %v231 = vmul.f32 %v209, %v223
        %v232 = vmul.f32 %v210, %v223
        %v233 = vmul.f32 %v211, %v223
        %v234 = vmul.f32 %v212, %v223
        %v235 = vmul.f32 %v213, %v223
        %v236 = vmul.f32 %v214, %v223
        %v237 = vmul.f32 %v215, %v223
        %v238 = vmul.f32 %v216, %v223
        %v239 = vmul.f32 %v217, %v223
        %v240 = vmul.f32 %v218, %v223
        %vm241 = vcmask 523264
        %v242 = vsel %vm241, %v225, 0.0
        %243 = vadd.xlane.f32.xlu0 %v242
        %v244 = vpop.xlane.xlu0 %243
        %v245 = vsel %vm241, %v226, 0.0
        %246 = vadd.xlane.f32.xlu0 %v245
        %v247 = vpop.xlane.xlu0 %246
        %v248 = vsel %vm241, %v227, 0.0
        %249 = vadd.xlane.f32.xlu0 %v248
        %v250 = vpop.xlane.xlu0 %249
        %v251 = vsel %vm241, %v228, 0.0
        %252 = vadd.xlane.f32.xlu0 %v251
        %v253 = vpop.xlane.xlu0 %252
        %v254 = vsel %vm241, %v229, 0.0
        %255 = vadd.xlane.f32.xlu0 %v254
        %v256 = vpop.xlane.xlu0 %255
        %v257 = vsel %vm241, %v230, 0.0
        %258 = vadd.xlane.f32.xlu0 %v257
        %v259 = vpop.xlane.xlu0 %258
        %v260 = vsel %vm241, %v231, 0.0
        %261 = vadd.xlane.f32.xlu0 %v260
        %v262 = vpop.xlane.xlu0 %261
        %v263 = vsel %vm241, %v232, 0.0
        %264 = vadd.xlane.f32.xlu0 %v263
        %v265 = vpop.xlane.xlu0 %264
        %v266 = vsel %vm241, %v233, 0.0
        %267 = vadd.xlane.f32.xlu0 %v266
        %v268 = vpop.xlane.xlu0 %267
        %v269 = vsel %vm241, %v234, 0.0
        %270 = vadd.xlane.f32.xlu0 %v269
        %v271 = vpop.xlane.xlu0 %270
        %v272 = vsel %vm241, %v235, 0.0
        %273 = vadd.xlane.f32.xlu0 %v272
        %v274 = vpop.xlane.xlu0 %273
        %v275 = vsel %vm241, %v236, 0.0
        %276 = vadd.xlane.f32.xlu0 %v275
        %v277 = vpop.xlane.xlu0 %276
        %v278 = vsel %vm241, %v237, 0.0
        %279 = vadd.xlane.f32.xlu0 %v278
        %v280 = vpop.xlane.xlu0 %279
        %v281 = vsel %vm241, %v238, 0.0
        %282 = vadd.xlane.f32.xlu0 %v281
        %v283 = vpop.xlane.xlu0 %282
        %v284 = vsel %vm241, %v239, 0.0
        %285 = vadd.xlane.f32.xlu0 %v284
        %v286 = vpop.xlane.xlu0 %285
        %v287 = vsel %vm241, %v240, 0.0
        %288 = vadd.xlane.f32.xlu0 %v287
        %v289 = vpop.xlane.xlu0 %288
        %v306 = vlaneseq
        %v307 = vand.u32 %v306, 127
        %v308 = vlaneseq
        %v309 = vshrl.u32 %v308, 7
        %v310 = vsub.s32 %v307, %v309
        %v311 = vrot.slane %v244, %v310
        %v312 = vadd.s32 %v307, 4294967288
        %v313 = vlaneseq
        %v314 = vshrl.u32 %v313, 7
        %v315 = vsub.s32 %v312, %v314
        %v316 = vrot.slane %v247, %v315
        %vm317 = vcmask 130112
        %v318 = vsel %vm317, %v316, %v311
        %v319 = vlaneseq
        %v320 = vshrl.u32 %v319, 7
        %v321 = vsub.s32 %v307, %v320
        %v322 = vrot.slane %v250, %v321
        %v323 = vlaneseq
        %v324 = vshrl.u32 %v323, 7
        %v325 = vsub.s32 %v312, %v324
        %v326 = vrot.slane %v253, %v325
        %v327 = vsel %vm317, %v326, %v322
        %v328 = vlaneseq
        %v329 = vshrl.u32 %v328, 7
        %v330 = vsub.s32 %v307, %v329
        %v331 = vrot.slane %v256, %v330
        %v332 = vlaneseq
        %v333 = vshrl.u32 %v332, 7
        %v334 = vsub.s32 %v312, %v333
        %v335 = vrot.slane %v259, %v334
        %v336 = vsel %vm317, %v335, %v331
        %v337 = vlaneseq
        %v338 = vshrl.u32 %v337, 7
        %v339 = vsub.s32 %v307, %v338
        %v340 = vrot.slane %v262, %v339
        %v341 = vlaneseq
        %v342 = vshrl.u32 %v341, 7
        %v343 = vsub.s32 %v312, %v342
        %v344 = vrot.slane %v265, %v343
        %v345 = vsel %vm317, %v344, %v340
        %v346 = vlaneseq
        %v347 = vshrl.u32 %v346, 7
        %v348 = vsub.s32 %v307, %v347
        %v349 = vrot.slane %v268, %v348
        %v350 = vlaneseq
        %v351 = vshrl.u32 %v350, 7
        %v352 = vsub.s32 %v312, %v351
        %v353 = vrot.slane %v271, %v352
        %v354 = vsel %vm317, %v353, %v349
        %v355 = vlaneseq
        %v356 = vshrl.u32 %v355, 7
        %v357 = vsub.s32 %v307, %v356
        %v358 = vrot.slane %v274, %v357
        %v359 = vlaneseq
        %v360 = vshrl.u32 %v359, 7
        %v361 = vsub.s32 %v312, %v360
        %v362 = vrot.slane %v277, %v361
        %v363 = vsel %vm317, %v362, %v358
        %v364 = vlaneseq
        %v365 = vshrl.u32 %v364, 7
        %v366 = vsub.s32 %v307, %v365
        %v367 = vrot.slane %v280, %v366
        %v368 = vlaneseq
        %v369 = vshrl.u32 %v368, 7
        %v370 = vsub.s32 %v312, %v369
        %v371 = vrot.slane %v283, %v370
        %v372 = vsel %vm317, %v371, %v367
        %v373 = vlaneseq
        %v374 = vshrl.u32 %v373, 7
        %v375 = vsub.s32 %v307, %v374
        %v376 = vrot.slane %v286, %v375
        %v377 = vlaneseq
        %v378 = vshrl.u32 %v377, 7
        %v379 = vsub.s32 %v312, %v378
        %v380 = vrot.slane %v289, %v379
        %v381 = vsel %vm317, %v380, %v376
        %vm382 = vcmask 1041409
        %v383 = vsel %vm382, %v327, %v318
        %vm384 = vcmask 1042434
        %v385 = vsel %vm384, %v336, %v383
        %vm386 = vcmask 1043459
        %v387 = vsel %vm386, %v345, %v385
        %vm388 = vcmask 1044484
        %v389 = vsel %vm388, %v354, %v387
        %vm390 = vcmask 1045509
        %v391 = vsel %vm390, %v363, %v389
        %vm392 = vcmask 1046534
        %v393 = vsel %vm392, %v372, %v391
        %vm394 = vcmask 1047559
        %v395 = vsel %vm394, %v381, %v393
        %vm397 = vcmask 130048
        %v398 = vsel %vm397, %v395, -inf
        %399 = vmax.xlane.f32.xlu0 %v398
        %v400 = vpop.xlane.xlu0 %399
        %v402 = vlaneseq
        %v403 = vshrl.u32 %v402, 7
        %v404 = vsub.s32 0, %v403
        %v405 = vrot.slane %v400, %v404
        %v406 = vlaneseq
        %v407 = vshrl.u32 %v406, 7
        %v408 = vsub.s32 1, %v407
        %v409 = vrot.slane %v400, %v408
        %v410 = vlaneseq
        %v411 = vshrl.u32 %v410, 7
        %v412 = vsub.s32 2, %v411
        %v413 = vrot.slane %v400, %v412
        %v414 = vlaneseq
        %v415 = vshrl.u32 %v414, 7
        %v416 = vsub.s32 3, %v415
        %v417 = vrot.slane %v400, %v416
        %v418 = vlaneseq
        %v419 = vshrl.u32 %v418, 7
        %v420 = vsub.s32 4, %v419
        %v421 = vrot.slane %v400, %v420
        %v422 = vlaneseq
        %v423 = vshrl.u32 %v422, 7
        %v424 = vsub.s32 5, %v423
        %v425 = vrot.slane %v400, %v424
        %v426 = vlaneseq
        %v427 = vshrl.u32 %v426, 7
        %v428 = vsub.s32 6, %v427
        %v429 = vrot.slane %v400, %v428
        %v430 = vlaneseq
        %v431 = vshrl.u32 %v430, 7
        %v432 = vsub.s32 7, %v431
        %v433 = vrot.slane %v400, %v432
        %v442 = vsub.f32 %v244, %v405
        %v443 = vsub.f32 %v247, %v405
        %v444 = vsub.f32 %v250, %v409
        %v445 = vsub.f32 %v253, %v409
        %v446 = vsub.f32 %v256, %v413
        %v447 = vsub.f32 %v259, %v413
        %v448 = vsub.f32 %v262, %v417
        %v449 = vsub.f32 %v265, %v417
        %v450 = vsub.f32 %v268, %v421
        %v451 = vsub.f32 %v271, %v421
        %v452 = vsub.f32 %v274, %v425
        %v453 = vsub.f32 %v277, %v425
        %v454 = vsub.f32 %v280, %v429
        %v455 = vsub.f32 %v283, %v429
        %v456 = vsub.f32 %v286, %v433
        %v457 = vsub.f32 %v289, %v433
        %v458 = vmul.f32 %v442, 1.442695
        %v459 = vpow.pop %v458
        %v460 = vmul.f32 %v443, 1.442695
        %v461 = vpow.pop %v460
        %v462 = vmul.f32 %v444, 1.442695
        %v463 = vpow.pop %v462
        %v464 = vmul.f32 %v445, 1.442695
        %v465 = vpow.pop %v464
        %v466 = vmul.f32 %v446, 1.442695
        %v467 = vpow.pop %v466
        %v468 = vmul.f32 %v447, 1.442695
        %v469 = vpow.pop %v468
        %v470 = vmul.f32 %v448, 1.442695
        %v471 = vpow.pop %v470
        %v472 = vmul.f32 %v449, 1.442695
        %v473 = vpow.pop %v472
        %v474 = vmul.f32 %v450, 1.442695
        %v475 = vpow.pop %v474
        %v476 = vmul.f32 %v451, 1.442695
        %v477 = vpow.pop %v476
        %v478 = vmul.f32 %v452, 1.442695
        %v479 = vpow.pop %v478
        %v480 = vmul.f32 %v453, 1.442695
        %v481 = vpow.pop %v480
        %v482 = vmul.f32 %v454, 1.442695
        %v483 = vpow.pop %v482
        %v484 = vmul.f32 %v455, 1.442695
        %v485 = vpow.pop %v484
        %v486 = vmul.f32 %v456, 1.442695
        %v487 = vpow.pop %v486
        %v488 = vmul.f32 %v457, 1.442695
        %v489 = vpow.pop %v488
        %506 = vset.pattern.permute.xlu0 0
        %507 = vperm.xlu0 %506, %v459
        %v508 = vpop.permute.xlu0 %507
        %509 = vset.pattern.permute.xlu0 0
        %510 = vperm.xlu0 %509, %v461
        %v511 = vpop.permute.xlu0 %510
        %512 = vset.pattern.permute.xlu0 0
        %513 = vperm.xlu0 %512, %v463
        %v514 = vpop.permute.xlu0 %513
        %515 = vset.pattern.permute.xlu0 0
        %516 = vperm.xlu0 %515, %v465
        %v517 = vpop.permute.xlu0 %516
        %518 = vset.pattern.permute.xlu0 0
        %519 = vperm.xlu0 %518, %v467
        %v520 = vpop.permute.xlu0 %519
        %521 = vset.pattern.permute.xlu0 0
        %522 = vperm.xlu0 %521, %v469
        %v523 = vpop.permute.xlu0 %522
        %524 = vset.pattern.permute.xlu0 0
        %525 = vperm.xlu0 %524, %v471
        %v526 = vpop.permute.xlu0 %525
        %527 = vset.pattern.permute.xlu0 0
        %528 = vperm.xlu0 %527, %v473
        %v529 = vpop.permute.xlu0 %528
        %530 = vset.pattern.permute.xlu0 0
        %531 = vperm.xlu0 %530, %v475
        %v532 = vpop.permute.xlu0 %531
        %533 = vset.pattern.permute.xlu0 0
        %534 = vperm.xlu0 %533, %v477
        %v535 = vpop.permute.xlu0 %534
        %536 = vset.pattern.permute.xlu0 0
        %537 = vperm.xlu0 %536, %v479
        %v538 = vpop.permute.xlu0 %537
        %539 = vset.pattern.permute.xlu0 0
        %540 = vperm.xlu0 %539, %v481
        %v541 = vpop.permute.xlu0 %540
        %542 = vset.pattern.permute.xlu0 0
        %543 = vperm.xlu0 %542, %v483
        %v544 = vpop.permute.xlu0 %543
        %545 = vset.pattern.permute.xlu0 0
        %546 = vperm.xlu0 %545, %v485
        %v547 = vpop.permute.xlu0 %546
        %548 = vset.pattern.permute.xlu0 0
        %549 = vperm.xlu0 %548, %v487
        %v550 = vpop.permute.xlu0 %549
        %551 = vset.pattern.permute.xlu0 0
        %552 = vperm.xlu0 %551, %v489
        %v553 = vpop.permute.xlu0 %552
        %v554 = vlaneseq
        %v555 = vshrl.u32 %v554, 7
        %v556 = vsub.s32 %v307, %v555
        %v557 = vrot.slane %v508, %v556
        %v558 = vlaneseq
        %v559 = vshrl.u32 %v558, 7
        %v560 = vsub.s32 %v312, %v559
        %v561 = vrot.slane %v511, %v560
        %v562 = vsel %vm317, %v561, %v557
        %v563 = vlaneseq
        %v564 = vshrl.u32 %v563, 7
        %v565 = vsub.s32 %v307, %v564
        %v566 = vrot.slane %v514, %v565
        %v567 = vlaneseq
        %v568 = vshrl.u32 %v567, 7
        %v569 = vsub.s32 %v312, %v568
        %v570 = vrot.slane %v517, %v569
        %v571 = vsel %vm317, %v570, %v566
        %v572 = vlaneseq
        %v573 = vshrl.u32 %v572, 7
        %v574 = vsub.s32 %v307, %v573
        %v575 = vrot.slane %v520, %v574
        %v576 = vlaneseq
        %v577 = vshrl.u32 %v576, 7
        %v578 = vsub.s32 %v312, %v577
        %v579 = vrot.slane %v523, %v578
        %v580 = vsel %vm317, %v579, %v575
        %v581 = vlaneseq
        %v582 = vshrl.u32 %v581, 7
        %v583 = vsub.s32 %v307, %v582
        %v584 = vrot.slane %v526, %v583
        %v585 = vlaneseq
        %v586 = vshrl.u32 %v585, 7
        %v587 = vsub.s32 %v312, %v586
        %v588 = vrot.slane %v529, %v587
        %v589 = vsel %vm317, %v588, %v584
        %v590 = vlaneseq
        %v591 = vshrl.u32 %v590, 7
        %v592 = vsub.s32 %v307, %v591
        %v593 = vrot.slane %v532, %v592
        %v594 = vlaneseq
        %v595 = vshrl.u32 %v594, 7
        %v596 = vsub.s32 %v312, %v595
        %v597 = vrot.slane %v535, %v596
        %v598 = vsel %vm317, %v597, %v593
        %v599 = vlaneseq
        %v600 = vshrl.u32 %v599, 7
        %v601 = vsub.s32 %v307, %v600
        %v602 = vrot.slane %v538, %v601
        %v603 = vlaneseq
        %v604 = vshrl.u32 %v603, 7
        %v605 = vsub.s32 %v312, %v604
        %v606 = vrot.slane %v541, %v605
        %v607 = vsel %vm317, %v606, %v602
        %v608 = vlaneseq
        %v609 = vshrl.u32 %v608, 7
        %v610 = vsub.s32 %v307, %v609
        %v611 = vrot.slane %v544, %v610
        %v612 = vlaneseq
        %v613 = vshrl.u32 %v612, 7
        %v614 = vsub.s32 %v312, %v613
        %v615 = vrot.slane %v547, %v614
        %v616 = vsel %vm317, %v615, %v611
        %v617 = vlaneseq
        %v618 = vshrl.u32 %v617, 7
        %v619 = vsub.s32 %v307, %v618
        %v620 = vrot.slane %v550, %v619
        %v621 = vlaneseq
        %v622 = vshrl.u32 %v621, 7
        %v623 = vsub.s32 %v312, %v622
        %v624 = vrot.slane %v553, %v623
        %v625 = vsel %vm317, %v624, %v620
        %v626 = vsel %vm382, %v571, %v562
        %v627 = vsel %vm384, %v580, %v626
        %v628 = vsel %vm386, %v589, %v627
        %v629 = vsel %vm388, %v598, %v628
        %v630 = vsel %vm390, %v607, %v629
        %v631 = vsel %vm392, %v616, %v630
        %v632 = vsel %vm394, %v625, %v631
        %v634 = vsel %vm397, %v632, 0.0
        %635 = vadd.xlane.f32.xlu0 %v634
        %v636 = vpop.xlane.xlu0 %635
        %v637 = vrcp.pop %v636
        %v639 = vlaneseq
        %v640 = vshrl.u32 %v639, 7
        %v641 = vsub.s32 0, %v640
        %v642 = vrot.slane %v637, %v641
        %v643 = vlaneseq
        %v644 = vshrl.u32 %v643, 7
        %v645 = vsub.s32 1, %v644
        %v646 = vrot.slane %v637, %v645
        %v647 = vlaneseq
        %v648 = vshrl.u32 %v647, 7
        %v649 = vsub.s32 2, %v648
        %v650 = vrot.slane %v637, %v649
        %v651 = vlaneseq
        %v652 = vshrl.u32 %v651, 7
        %v653 = vsub.s32 3, %v652
        %v654 = vrot.slane %v637, %v653
        %v655 = vlaneseq
        %v656 = vshrl.u32 %v655, 7
        %v657 = vsub.s32 4, %v656
        %v658 = vrot.slane %v637, %v657
        %v659 = vlaneseq
        %v660 = vshrl.u32 %v659, 7
        %v661 = vsub.s32 5, %v660
        %v662 = vrot.slane %v637, %v661
        %v663 = vlaneseq
        %v664 = vshrl.u32 %v663, 7
        %v665 = vsub.s32 6, %v664
        %v666 = vrot.slane %v637, %v665
        %v667 = vlaneseq
        %v668 = vshrl.u32 %v667, 7
        %v669 = vsub.s32 7, %v668
        %v670 = vrot.slane %v637, %v669
        %v679 = vmul.f32 %v459, %v642
        %v680 = vmul.f32 %v461, %v642
        %v681 = vmul.f32 %v463, %v646
        %v682 = vmul.f32 %v465, %v646
        %v683 = vmul.f32 %v467, %v650
        %v684 = vmul.f32 %v469, %v650
        %v685 = vmul.f32 %v471, %v654
        %v686 = vmul.f32 %v473, %v654
        %v687 = vmul.f32 %v475, %v658
        %v688 = vmul.f32 %v477, %v658
        %v689 = vmul.f32 %v479, %v662
        %v690 = vmul.f32 %v481, %v662
        %v691 = vmul.f32 %v483, %v666
        %v692 = vmul.f32 %v485, %v666
        %v693 = vmul.f32 %v487, %v670
        %v694 = vmul.f32 %v489, %v670
        %696 = vset.pattern.permute.xlu0 0
        %697 = vperm.xlu0 %696, %v679
        %v698 = vpop.permute.xlu0 %697
        %701 = vset.pattern.permute.xlu0 0
        %702 = vperm.xlu0 %701, %v680
        %v703 = vpop.permute.xlu0 %702
        %706 = vset.pattern.permute.xlu0 0
        %707 = vperm.xlu0 %706, %v681
        %v708 = vpop.permute.xlu0 %707
        %711 = vset.pattern.permute.xlu0 0
        %712 = vperm.xlu0 %711, %v682
        %v713 = vpop.permute.xlu0 %712
        %716 = vset.pattern.permute.xlu0 0
        %717 = vperm.xlu0 %716, %v683
        %v718 = vpop.permute.xlu0 %717
        %721 = vset.pattern.permute.xlu0 0
        %722 = vperm.xlu0 %721, %v684
        %v723 = vpop.permute.xlu0 %722
        %726 = vset.pattern.permute.xlu0 0
        %727 = vperm.xlu0 %726, %v685
        %v728 = vpop.permute.xlu0 %727
        %731 = vset.pattern.permute.xlu0 0
        %732 = vperm.xlu0 %731, %v686
        %v733 = vpop.permute.xlu0 %732
        %736 = vset.pattern.permute.xlu0 0
        %737 = vperm.xlu0 %736, %v687
        %v738 = vpop.permute.xlu0 %737
        %741 = vset.pattern.permute.xlu0 0
        %742 = vperm.xlu0 %741, %v688
        %v743 = vpop.permute.xlu0 %742
        %746 = vset.pattern.permute.xlu0 0
        %747 = vperm.xlu0 %746, %v689
        %v748 = vpop.permute.xlu0 %747
        %751 = vset.pattern.permute.xlu0 0
        %752 = vperm.xlu0 %751, %v690
        %v753 = vpop.permute.xlu0 %752
        %756 = vset.pattern.permute.xlu0 0
        %757 = vperm.xlu0 %756, %v691
        %v758 = vpop.permute.xlu0 %757
        %761 = vset.pattern.permute.xlu0 0
        %762 = vperm.xlu0 %761, %v692
        %v763 = vpop.permute.xlu0 %762
        %766 = vset.pattern.permute.xlu0 0
        %767 = vperm.xlu0 %766, %v693
        %v768 = vpop.permute.xlu0 %767
        %771 = vset.pattern.permute.xlu0 0
        %772 = vperm.xlu0 %771, %v694
        %v773 = vpop.permute.xlu0 %772
        %v775 = vmul.f32 %v203, %v698
        %v776 = vmul.f32 %v204, %v703
        %v777 = vmul.f32 %v205, %v708
        %v778 = vmul.f32 %v206, %v713
        %v779 = vmul.f32 %v207, %v718
        %v780 = vmul.f32 %v208, %v723
        %v781 = vmul.f32 %v209, %v728
        %v782 = vmul.f32 %v210, %v733
        %v783 = vmul.f32 %v211, %v738
        %v784 = vmul.f32 %v212, %v743
        %v785 = vmul.f32 %v213, %v748
        %v786 = vmul.f32 %v214, %v753
        %v787 = vmul.f32 %v215, %v758
        %v788 = vmul.f32 %v216, %v763
        %v789 = vmul.f32 %v217, %v768
        %v790 = vmul.f32 %v218, %v773
        %v791 = vsel %vm241, %v775, 0.0
        %v792 = vsel %vm241, %v776, 0.0
        %v793 = vadd.f32 %v791, %v792
        %v794 = vrot.slane %v793, 4
        %v795 = vadd.f32 %v793, %v794
        %v796 = vrot.slane %v795, 2
        %v797 = vadd.f32 %v795, %v796
        %v798 = vrot.slane %v797, 1
        %v799 = vadd.f32 %v797, %v798
        %v800 = vsel %vm241, %v777, 0.0
        %v801 = vsel %vm241, %v778, 0.0
        %v802 = vadd.f32 %v800, %v801
        %v803 = vrot.slane %v802, 4
        %v804 = vadd.f32 %v802, %v803
        %v805 = vrot.slane %v804, 2
        %v806 = vadd.f32 %v804, %v805
        %v807 = vrot.slane %v806, 1
        %v808 = vadd.f32 %v806, %v807
        %v809 = vsel %vm241, %v779, 0.0
        %v810 = vsel %vm241, %v780, 0.0
        %v811 = vadd.f32 %v809, %v810
        %v812 = vrot.slane %v811, 4
        %v813 = vadd.f32 %v811, %v812
        %v814 = vrot.slane %v813, 2
        %v815 = vadd.f32 %v813, %v814
        %v816 = vrot.slane %v815, 1
        %v817 = vadd.f32 %v815, %v816
        %v818 = vsel %vm241, %v781, 0.0
        %v819 = vsel %vm241, %v782, 0.0
        %v820 = vadd.f32 %v818, %v819
        %v821 = vrot.slane %v820, 4
        %v822 = vadd.f32 %v820, %v821
        %v823 = vrot.slane %v822, 2
        %v824 = vadd.f32 %v822, %v823
        %v825 = vrot.slane %v824, 1
        %v826 = vadd.f32 %v824, %v825
        %v827 = vsel %vm241, %v783, 0.0
        %v828 = vsel %vm241, %v784, 0.0
        %v829 = vadd.f32 %v827, %v828
        %v830 = vrot.slane %v829, 4
        %v831 = vadd.f32 %v829, %v830
        %v832 = vrot.slane %v831, 2
        %v833 = vadd.f32 %v831, %v832
        %v834 = vrot.slane %v833, 1
        %v835 = vadd.f32 %v833, %v834
        %v836 = vsel %vm241, %v785, 0.0
        %v837 = vsel %vm241, %v786, 0.0
        %v838 = vadd.f32 %v836, %v837
        %v839 = vrot.slane %v838, 4
        %v840 = vadd.f32 %v838, %v839
        %v841 = vrot.slane %v840, 2
        %v842 = vadd.f32 %v840, %v841
        %v843 = vrot.slane %v842, 1
        %v844 = vadd.f32 %v842, %v843
        %v845 = vsel %vm241, %v787, 0.0
        %v846 = vsel %vm241, %v788, 0.0
        %v847 = vadd.f32 %v845, %v846
        %v848 = vrot.slane %v847, 4
        %v849 = vadd.f32 %v847, %v848
        %v850 = vrot.slane %v849, 2
        %v851 = vadd.f32 %v849, %v850
        %v852 = vrot.slane %v851, 1
        %v853 = vadd.f32 %v851, %v852
        %v854 = vsel %vm241, %v789, 0.0
        %v855 = vsel %vm241, %v790, 0.0
        %v856 = vadd.f32 %v854, %v855
        %v857 = vrot.slane %v856, 4
        %v858 = vadd.f32 %v856, %v857
        %v859 = vrot.slane %v858, 2
        %v860 = vadd.f32 %v858, %v859
        %v861 = vrot.slane %v860, 1
        %v862 = vadd.f32 %v860, %v861
        %v871 = vsel %vm382, %v808, %v799
        %v872 = vsel %vm384, %v817, %v871
        %v873 = vsel %vm386, %v826, %v872
        %v874 = vsel %vm388, %v835, %v873
        %v875 = vsel %vm390, %v844, %v874
        %v876 = vsel %vm392, %v853, %v875
        %v877 = vsel %vm394, %v862, %v876
        %879 = vst.msk [vmem:[%s193] sm:$0xff] %vm241, %v877
        %v880 = vlaneseq
        %v881 = vshrl.u32 %v880, 7
        %v882 = vsub.s32 %v307, %v881
        %v883 = vrot.slane %v698, %v882
        %v884 = vlaneseq
        %v885 = vshrl.u32 %v884, 7
        %v886 = vsub.s32 %v312, %v885
        %v887 = vrot.slane %v703, %v886
        %v888 = vsel %vm317, %v887, %v883
        %v889 = vlaneseq
        %v890 = vshrl.u32 %v889, 7
        %v891 = vsub.s32 %v307, %v890
        %v892 = vrot.slane %v708, %v891
        %v893 = vlaneseq
        %v894 = vshrl.u32 %v893, 7
        %v895 = vsub.s32 %v312, %v894
        %v896 = vrot.slane %v713, %v895
        %v897 = vsel %vm317, %v896, %v892
        %v898 = vlaneseq
        %v899 = vshrl.u32 %v898, 7
        %v900 = vsub.s32 %v307, %v899
        %v901 = vrot.slane %v718, %v900
        %v902 = vlaneseq
        %v903 = vshrl.u32 %v902, 7
        %v904 = vsub.s32 %v312, %v903
        %v905 = vrot.slane %v723, %v904
        %v906 = vsel %vm317, %v905, %v901
        %v907 = vlaneseq
        %v908 = vshrl.u32 %v907, 7
        %v909 = vsub.s32 %v307, %v908
        %v910 = vrot.slane %v728, %v909
        %v911 = vlaneseq
        %v912 = vshrl.u32 %v911, 7
        %v913 = vsub.s32 %v312, %v912
        %v914 = vrot.slane %v733, %v913
        %v915 = vsel %vm317, %v914, %v910
        %v916 = vlaneseq
        %v917 = vshrl.u32 %v916, 7
        %v918 = vsub.s32 %v307, %v917
        %v919 = vrot.slane %v738, %v918
        %v920 = vlaneseq
        %v921 = vshrl.u32 %v920, 7
        %v922 = vsub.s32 %v312, %v921
        %v923 = vrot.slane %v743, %v922
        %v924 = vsel %vm317, %v923, %v919
        %v925 = vlaneseq
        %v926 = vshrl.u32 %v925, 7
        %v927 = vsub.s32 %v307, %v926
        %v928 = vrot.slane %v748, %v927
        %v929 = vlaneseq
        %v930 = vshrl.u32 %v929, 7
        %v931 = vsub.s32 %v312, %v930
        %v932 = vrot.slane %v753, %v931
        %v933 = vsel %vm317, %v932, %v928
        %v934 = vlaneseq
        %v935 = vshrl.u32 %v934, 7
        %v936 = vsub.s32 %v307, %v935
        %v937 = vrot.slane %v758, %v936
        %v938 = vlaneseq
        %v939 = vshrl.u32 %v938, 7
        %v940 = vsub.s32 %v312, %v939
        %v941 = vrot.slane %v763, %v940
        %v942 = vsel %vm317, %v941, %v937
        %v943 = vlaneseq
        %v944 = vshrl.u32 %v943, 7
        %v945 = vsub.s32 %v307, %v944
        %v946 = vrot.slane %v768, %v945
        %v947 = vlaneseq
        %v948 = vshrl.u32 %v947, 7
        %v949 = vsub.s32 %v312, %v948
        %v950 = vrot.slane %v773, %v949
        %v951 = vsel %vm317, %v950, %v946
        %v952 = vsel %vm382, %v897, %v888
        %v953 = vsel %vm384, %v906, %v952
        %v954 = vsel %vm386, %v915, %v953
        %v955 = vsel %vm388, %v924, %v954
        %v956 = vsel %vm390, %v933, %v955
        %v957 = vsel %vm392, %v942, %v956
        %v958 = vsel %vm394, %v951, %v957
        %960 = vst.msk [vmem:[%s200] sm:$0xff] %vm397, %v958
        %s961 = sand.u32 %s79, 1
        %s962 = scalar_lea.sflag [#allocation4], %s961
        %s963 = sand.u32 %s79, 1
        %s964 = smul.addr %s963, 8
        %s965 = scalar_lea.vmem [#allocation5], %s964
        %s966 = sand.u32 %s105, 1
        %s967 = scalar_lea.sflag [#allocation7], %s966
        %s968 = sand.u32 %s105, 1
        %s969 = smul.addr %s968, 8
        %s970 = scalar_lea.vmem [#allocation6], %s969
        // Predicated region
        $region33: #{tpu_custom_call.1} parent=27 // pred_check
          %p971 = pneg %p89
        $region34: #{tpu_custom_call.1} parent=27 // pred_check_branch
          %973 = sbr.rel (%p971) target = $region36
        $region35: #{tpu_custom_call.1} parent=27 // pred_region
          %s975 = ssub.s32 128, 128
          %976 = vsyncadd %s962, %s975
          %s977 = smul.addr %s24, 128
          %s978 = scalar_lea.hbm %s2, %s977
          %s980 = sshll.u32 %s965, 4
          %s981 = int_to_ptr.vmem [resolvable:$true] %s980
          %983 = dma.vmem_to_hbm [thread:$0]  %s981, 128, %s978, %s962
        $region36: #{tpu_custom_call.1} parent=27 // pred_fallthru
          _
        // Predicated region
        $region37: #{tpu_custom_call.1} parent=27 // pred_check
          %p984 = pneg %p115
        $region38: #{tpu_custom_call.1} parent=27 // pred_check_branch
          %986 = sbr.rel (%p984) target = $region40
        $region39: #{tpu_custom_call.1} parent=27 // pred_region
          %s988 = ssub.s32 128, 128
          %989 = vsyncadd %s967, %s988
          %s990 = smul.addr %s24, 128
          %s991 = scalar_lea.hbm %s3, %s990
          %s993 = sshll.u32 %s970, 4
          %s994 = int_to_ptr.vmem [resolvable:$true] %s993
          %996 = dma.vmem_to_hbm [thread:$0]  %s994, 128, %s991, %s967
        $region40: #{tpu_custom_call.1} parent=27 // pred_fallthru
          _
      $region28: #{tpu_custom_call.1} parent=5 // pred_fallthru
        _
      %p997 = scmp.le.s32.totalorder 2, %s19
      // Predicated region
      $region41: #{tpu_custom_call.1} parent=5 // pred_check
        %p998 = pneg %p997
      $region42: #{tpu_custom_call.1} parent=5 // pred_check_branch
        %1000 = sbr.rel (%p998) target = $region44
      $region43: #{tpu_custom_call.1} parent=5 // pred_region
        %s1001 = ssub.s32 %s19, 2
        // Predicated region
        $region45: #{tpu_custom_call.1} parent=43 // pred_check
          %p1002 = pneg %p95
        $region46: #{tpu_custom_call.1} parent=43 // pred_check_branch
          %1004 = sbr.rel (%p1002) target = $region48
        $region47: #{tpu_custom_call.1} parent=43 // pred_region
          %s1005 = sand.u32 %s80, 1
          %s1006 = scalar_lea.sflag [#allocation4], %s1005
          %s1007 = sand.u32 %s80, 1
          %s1008 = smul.addr %s1007, 8
          %s1009 = scalar_lea.vmem [#allocation5], %s1008
          %1010 = dma.done %s1006, 128
        $region48: #{tpu_custom_call.1} parent=43 // pred_fallthru
          _
        // Predicated region
        $region49: #{tpu_custom_call.1} parent=43 // pred_check
          %p1011 = pneg %p121
        $region50: #{tpu_custom_call.1} parent=43 // pred_check_branch
          %1013 = sbr.rel (%p1011) target = $region52
        $region51: #{tpu_custom_call.1} parent=43 // pred_region
          %s1014 = sand.u32 %s106, 1
          %s1015 = scalar_lea.sflag [#allocation7], %s1014
          %s1016 = sand.u32 %s106, 1
          %s1017 = smul.addr %s1016, 8
          %s1018 = scalar_lea.vmem [#allocation6], %s1017
          %1019 = dma.done %s1015, 128
        $region52: #{tpu_custom_call.1} parent=43 // pred_fallthru
          _
      $region44: #{tpu_custom_call.1} parent=5 // pred_fallthru
        _
    $region6: #{tpu_custom_call.1} parent=1 // loop_footer
      %s23 = sadd.s32 1, %s19
    $region7: #{tpu_custom_call.1} parent=1 // loop_footer_branch
      %18 = sbr.rel target = $region3
    $region8: #{tpu_custom_call.1} parent=1 // loop_exit
      _
    %1020 = vsyncpa [#allocation3], 1
    %s1021 = scalar_lea.sflag [#allocation3], 1
    %1022 = vsyncpa %s1021, 1
    %1023 = vsyncpa [#allocation4], 1
    %s1024 = scalar_lea.sflag [#allocation4], 1
    %1025 = vsyncpa %s1024, 1
    %1026 = vsyncpa [#allocation7], 1
    %s1027 = scalar_lea.sflag [#allocation7], 1
    %1028 = vsyncpa %s1027, 1

</llo_original>
